<compile_context>
chip_gen: v6e
topology: v6e:2x2x1
jax: 0.10.0
libtpu: 0.0.40
codegen_flags: <defaults>
</compile_context>

<pallas_src>
import functools

import jax
import jax.numpy as jnp
from jax.experimental import pallas as pl
from jax.experimental.pallas import tpu as pltpu


def _round_up(x, m):
    return ((x + m - 1) // m) * m


def _sublane_mult(dtype):
    # VMEM second-minor tiling: 8 rows for 4-byte, 16 for 2-byte, 32 for 1-byte.
    return max(8, 32 // jnp.dtype(dtype).itemsize)


def _vmem_block_bytes(rows, cols, dtype):
    # Bytes a (rows, cols) block actually occupies in VMEM (with tile padding).
    return (_round_up(rows, _sublane_mult(dtype)) * _round_up(cols, 128)
            * jnp.dtype(dtype).itemsize)


def _vmem_capacity_bytes():
    try:
        return int(pltpu.get_tpu_info().vmem_capacity_bytes)
    except Exception:
        return 64 * 1024 * 1024     # v7x-safe fallback


def _choose_tiles(m, k, n_eff, in_dtype, out_dtype, *, vmem_capacity,
                  target_tm=1024, min_tiles=8):
    """Pick (tm, tn).

    tm is as large as a generation-aware VMEM budget allows (amortizes the
    ~0.35us/grid-step pipeline overhead) but small enough that the M grid has
    >= min_tiles steps.  tn == n_eff (weight resident) unless the padded,
    double-buffered weight block would be too big, in which case N is tiled.
    All byte counts use real VMEM tile padding and the correct dtypes.
    """
    budget = int(vmem_capacity * 0.45)

    # Keep the whole weight resident unless its (conservatively double-
    # buffered, tile-padded) footprint is too large -> then tile N.
    if (2 * _vmem_block_bytes(k, n_eff, in_dtype) > 12 * 1024 * 1024
            and n_eff % 128 == 0):
        tn = next(t for t in (512, 256, 128) if n_eff % t == 0)
    else:
        tn = n_eff

    in_isz = jnp.dtype(in_dtype).itemsize
    out_isz = jnp.dtype(out_dtype).itemsize
    fixed = (2 * _vmem_block_bytes(k, tn, in_dtype)           # weight (2 bufs)
             + 2 * _vmem_block_bytes(1, tn, jnp.float32))     # bias   (2 bufs)
    per_row = 2 * (_round_up(k, 128) * in_isz                 # x block (2 bufs)
                   + _round_up(tn, 128) * out_isz)            # out blk (2 bufs)
    cap_rows = max(8, (budget - fixed) // per_row)

    tm = min(target_tm, cap_rows)
    tm = min(tm, max(8, -(-m // min_tiles)))    # keep >= min_tiles grid steps
    align = max(_sublane_mult(in_dtype), _sublane_mult(out_dtype))
    tm = max(align, (tm // align) * align)
    tm = min(tm, _round_up(m, align))
    return int(tm), int(tn)


def _linear_kernel(x_ref, w_ref, b_ref, o_ref):
    # x_ref: (tm, K) compute dtype; w_ref: (K, tn) compute dtype (pre-transposed
    # in the wrapper -> canonical MXU (M,K)x(K,N) form, no in-kernel relayout);
    # b_ref: (1, tn) f32; o_ref: (tm, tn) out dtype.  Accumulation is f32.
    acc = jnp.dot(x_ref[...], w_ref[...], preferred_element_type=jnp.float32)
    o_ref[...] = (acc + b_ref[...]).astype(o_ref.dtype)


def _pallas_linear(x2d, w_kn, bias_row, out_dtype, *, tm, tn, vmem_limit_bytes):
    """x2d: (M, K), w_kn: (K, N), bias_row: (1, N) f32 -> (M, N) out_dtype."""
    m, k = x2d.shape
    k2, n = w_kn.shape
    assert k == k2 and bias_row.shape == (1, n)

    grid = (pl.cdiv(m, tm), pl.cdiv(n, tn))   # boundary tiles are masked
    in_isz = jnp.dtype(x2d.dtype).itemsize
    out_isz = jnp.dtype(out_dtype).itemsize
    cost = pl.CostEstimate(
        flops=2 * m * k * n,
        transcendentals=0,
        bytes_accessed=(m * k + k * n) * in_isz + n * 4 + m * n * out_isz,
    )

    return pl.pallas_call(
        _linear_kernel,
        out_shape=jax.ShapeDtypeStruct((m, n), out_dtype),
        grid_spec=pltpu.PrefetchScalarGridSpec(
            num_scalar_prefetch=0,
            grid=grid,
            in_specs=[
                # x block: constant along the inner N axis -> fetched once per i.
                pl.BlockSpec((tm, k), lambda i, j: (i, 0)),
                # Weight / bias: constant block index along i -> fetched once
                # per N tile (once total when the weight is fully resident).
                pl.BlockSpec((k, tn), lambda i, j: (0, j)),
                pl.BlockSpec((1, tn), lambda i, j: (0, j)),
            ],
            out_specs=pl.BlockSpec((tm, tn), lambda i, j: (i, j)),
        ),
        compiler_params=pltpu.CompilerParams(
            dimension_semantics=("parallel", "parallel"),
            vmem_limit_bytes=vmem_limit_bytes,
        ),
        cost_estimate=cost,
    )(x2d, w_kn, bias_row)


def patch_merging_forward(x, weight, bias, downscaling_factor, *,
                          compute_dtype=jnp.bfloat16, out_dtype=None,
                          target_tm=1024):
    """PatchMerging forward.

    x: (B, C, H, W) NCHW, same as the PyTorch module.
    weight: (out_channels, C * df**2)   (PyTorch nn.Linear layout).
    bias: (out_channels,).
    compute_dtype: MXU input dtype.  Defaults to bf16 (memory-bound kernel:
      halves activation/weight HBM traffic; accumulation stays f32).  Pass
      jnp.float32 or None for exact f32 semantics.
    out_dtype: output dtype (default: x.dtype).
    returns: (B, H//df, W//df, out_channels).
    """
    b, c, h, w = x.shape
    df = int(downscaling_factor)
    new_h, new_w = h // df, w // df
    n_out, k_w = weight.shape
    k = c * df * df
    assert k_w == k, (k_w, k)
    out_dtype = x.dtype if out_dtype is None else jnp.dtype(out_dtype)

    # nn.Unfold floors: explicitly drop trailing rows/cols that don't fill a
    # full patch (no-op when H, W are divisible by df).
    if h != new_h * df or w != new_w * df:
        x = x[:, :, :new_h * df, :new_w * df]

    # --- glue: nn.Unfold equivalent (feature order = (c, kh, kw)) ---
    # TODO(synk): fuse this unfold into the Pallas kernel (see header TODO).
    xr = x.reshape(b, c, new_h, df, new_w, df)
    xr = jnp.transpose(xr, (0, 2, 4, 1, 3, 5))         # (b, nh, nw, c, kh, kw)
    x2d = xr.reshape(b * new_h * new_w, k)              # (M, K)

    # --- adaptive output padding: lane-dense 128-padded stores only when the
    # pad is small; otherwise store the un-padded (masked) output directly ---
    n_pad = _round_up(n_out, 128)
    pad_out = (n_pad == n_out) or (n_pad / n_out) <= 1.25
    n_eff = n_pad if pad_out else n_out
    if n_eff != n_out:
        w_prep = jnp.pad(weight, ((0, n_eff - n_out), (0, 0)))
        b_row = jnp.pad(bias, (0, n_eff - n_out))
    else:
        w_prep, b_row = weight, bias
    b_row = b_row.reshape(1, n_eff).astype(jnp.float32)

    # One wrapper-side transpose of the (small) weight -> canonical MXU layout.
    w_kn = jnp.transpose(w_prep)                         # (K, n_eff)

    if compute_dtype is not None:
        x2d = x2d.astype(compute_dtype)
        w_kn = w_kn.astype(compute_dtype)

    # NOTE: K is left unpadded on purpose (bandwidth-bound regime).
    m = b * new_h * new_w
    vmem_cap = _vmem_capacity_bytes()
    tm, tn = _choose_tiles(m, k, n_eff, x2d.dtype, out_dtype,
                           vmem_capacity=vmem_cap, target_tm=target_tm)
    vmem_limit = max(32 * 1024 * 1024,
                     min(int(vmem_cap * 0.7), 112 * 1024 * 1024))

    out2d = _pallas_linear(x2d, w_kn, b_row, out_dtype, tm=tm, tn=tn,
                           vmem_limit_bytes=vmem_limit)   # (M, n_eff)
    if n_eff != n_out:
        out2d = out2d[:, :n_out]
    return out2d.reshape(b, new_h, new_w, n_out)


if __name__ == "__main__":
    # Small config consistent with the PyTorch module.
    in_channels, out_channels, downscaling_factor = 4, 32, 2
    B, C, H, W = 2, in_channels, 16, 16
    K = in_channels * downscaling_factor ** 2            # 16

    key = jax.random.PRNGKey(0)
    kx, kw_, kb = jax.random.split(key, 3)
    x = jax.random.normal(kx, (B, C, H, W), dtype=jnp.float32)
    bound = 1.0 / (K ** 0.5)
    weight = jax.random.uniform(kw_, (out_channels, K), jnp.float32, -bound, bound)
    bias = jax.random.uniform(kb, (out_channels,), jnp.float32, -bound, bound)

    # Pure-JAX reference (same unfold ordering + linear).
    df = downscaling_factor
    nh, nw = H // df, W // df
    x_unf = x.reshape(B, C, nh, df, nw, df)
    x_unf = jnp.transpose(x_unf, (0, 2, 4, 1, 3, 5)).reshape(B, nh, nw, K)
    ref = x_unf @ weight.T + bias

    # 1) Exact f32 path (tight tolerance) -- un-padded output branch (32 << 128).
    fwd_f32 = jax.jit(functools.partial(
        patch_merging_forward, downscaling_factor=df, compute_dtype=jnp.float32))
    out_f32 = jax.block_until_ready(fwd_f32(x, weight, bias))
    assert out_f32.shape == (B, nh, nw, out_channels), out_f32.shape
    assert jnp.allclose(out_f32, ref, atol=1e-5, rtol=1e-5), float(
        jnp.max(jnp.abs(out_f32 - ref)))

    # 2) Default fast path: bf16 inputs, f32 accumulation, f32 output.
    fwd_bf16 = jax.jit(functools.partial(
        patch_merging_forward, downscaling_factor=df))
    out_bf16 = jax.block_until_ready(fwd_bf16(x, weight, bias))
    assert out_bf16.shape == (B, nh, nw, out_channels), out_bf16.shape
    assert out_bf16.dtype == x.dtype
    assert jnp.allclose(out_bf16, ref, atol=1e-1, rtol=5e-2), float(
        jnp.max(jnp.abs(out_bf16 - ref)))

    # 3) Padded-output branch (n_out close to a multiple of 128).
    n_out2 = 120
    kw2, kb2 = jax.random.split(jax.random.PRNGKey(1))
    weight2 = jax.random.uniform(kw2, (n_out2, K), jnp.float32, -bound, bound)
    bias2 = jax.random.uniform(kb2, (n_out2,), jnp.float32, -bound, bound)
    ref2 = x_unf @ weight2.T + bias2
    out2 = jax.block_until_ready(fwd_f32(x, weight2, bias2))
    assert out2.shape == (B, nh, nw, n_out2), out2.shape
    assert jnp.allclose(out2, ref2, atol=1e-5, rtol=1e-5), float(
        jnp.max(jnp.abs(out2 - ref2)))

    print("KERNEL_OK")
</pallas_src>

<mosaic_0001>
module attributes {stable_mosaic.version = 11 : i64} {
  func.func @_linear_kernel(%arg0: i32, %arg1: i32, %arg2: memref<16x16xf32, #tpu.memory_space<vmem>>, %arg3: memref<16x32xf32, #tpu.memory_space<vmem>>, %arg4: memref<1x32xf32, #tpu.memory_space<vmem>>, %arg5: memref<16x32xf32, #tpu.memory_space<vmem>>) attributes {dimension_semantics = [#tpu.dimension_semantics<parallel>, #tpu.dimension_semantics<parallel>], iteration_bounds = array<i64: 8, 1>, scalar_prefetch = 0 : i64, scratch_operands = 0 : i64, tpu.core_type = #tpu.core_type<tc>, window_params = [{transform_indices = @transform_0, window_bounds = array<i64: 16, 16>}, {transform_indices = @transform_1, window_bounds = array<i64: 16, 32>}, {transform_indices = @transform_2, window_bounds = array<i64: 1, 32>}, {transform_indices = @transform_3, window_bounds = array<i64: 16, 32>}]} {
    %c0 = arith.constant 0 : index
    %c0_0 = arith.constant 0 : index
    %0 = vector.load %arg2[%c0, %c0_0] : memref<16x16xf32, #tpu.memory_space<vmem>>, vector<16x16xf32>
    %c0_1 = arith.constant 0 : index
    %c0_2 = arith.constant 0 : index
    %1 = vector.load %arg3[%c0_1, %c0_2] : memref<16x32xf32, #tpu.memory_space<vmem>>, vector<16x32xf32>
    %cst = arith.constant dense<0.000000e+00> : vector<16x32xf32>
    %2 = tpu.matmul %0, %1, %cst {dimension_numbers = #tpu.dot_dimension_numbers<[1], [0], [0], [1], [0, 0, 1, 1], [], []>} : vector<16x16xf32>, vector<16x32xf32>, vector<16x32xf32> -> vector<16x32xf32>
    %c0_3 = arith.constant 0 : index
    %c0_4 = arith.constant 0 : index
    %3 = vector.load %arg4[%c0_3, %c0_4] : memref<1x32xf32, #tpu.memory_space<vmem>>, vector<1x32xf32>
    %4 = vector.broadcast %3 : vector<1x32xf32> to vector<16x32xf32>
    %5 = arith.addf %2, %4 : vector<16x32xf32>
    %c0_5 = arith.constant 0 : index
    %c0_6 = arith.constant 0 : index
    %6 = vector.load %arg5[%c0_5, %c0_6] : memref<16x32xf32, #tpu.memory_space<vmem>>, vector<16x32xf32>
    tpu.vector_store %arg5[%c0_5, %c0_6], %5 {strides = array<i32>} : memref<16x32xf32, #tpu.memory_space<vmem>>, vector<16x32xf32>,
    return
  }
  func.func @transform_0(%arg0: i32, %arg1: i32) -> (i32, i32) {
    %c0_i32 = arith.constant 0 : i32
    %c0_i32_0 = arith.constant 0 : i32
    return %arg0, %c0_i32 : i32, i32
  }
  func.func @transform_1(%arg0: i32, %arg1: i32) -> (i32, i32) {
    %c0_i32 = arith.constant 0 : i32
    %c0_i32_0 = arith.constant 0 : i32
    return %c0_i32, %arg1 : i32, i32
  }
  func.func @transform_2(%arg0: i32, %arg1: i32) -> (i32, i32) {
    %c0_i32 = arith.constant 0 : i32
    %c0_i32_0 = arith.constant 0 : i32
    return %c0_i32, %arg1 : i32, i32
  }
  func.func @transform_3(%arg0: i32, %arg1: i32) -> (i32, i32) {
    %c0_i32 = arith.constant 0 : i32
    return %arg0, %arg1 : i32, i32
  }
}

</mosaic_0001>

<llo_original>
// kernel: patch_merging_forward.1
$region0: #{patch_merging_forward.1}
  #allocation0 [shape = 'u32[]', space=smem, size = 0x4, offset = 0x4, fixed_abs, tag = 'smem constant byte address 0x4 - core index']
  #allocation1 [shape = 'u32[144,128]{1,0:T(1,128)}', space=vmem, size = 0x12000, scoped, tag = 'internal scratch']
  %s0 = inlined_call_operand.vmem [shape: f32[128,16], index: 0, kind: input, shape index: {}]
  %s1 = inlined_call_operand.vmem [shape: f32[16,32], index: 1, kind: input, shape index: {}]
  %s2 = inlined_call_operand.vmem [shape: f32[1,32], index: 2, kind: input, shape index: {}]
  %s3 = inlined_call_operand.hbm [shape: f32[128,32], index: 3, kind: output, shape index: {}]
  %s4 = sld [smem:[#allocation0]]
  $region45: #{patch_merging_forward.1} parent=0
    _
  %s6 = ssub.s32 1, %s4
  %s7 = scalar_select 0, %s6, %s4
  $region1: #{patch_merging_forward.1} parent=0
    #allocation2 [shape = 'u8[16384]{0}', space=vmem, size = 0x4000, scoped, tag = 'output window, operand 0']
    #allocation3 [shape = 's32[2]{0}', space=sflag, size = 0x8, scoped, tag = 'scoped memory for patch_merging_forward.1']
    %8 = vsyncpa [#allocation3], 0
    %s9 = scalar_lea.sflag [#allocation3], 1
    %10 = vsyncpa %s9, 0
    loop: start=0, step=1, limit=10
    $region2: #{patch_merging_forward.1} parent=1 // loop_pre_header
      _
    $region3: #{patch_merging_forward.1} parent=1 // loop_header
      %s12 = sphi 0, %s16
      %p13 = scmp.ge.s32.totalorder %s12, 10
      %s19 = sphi 0, %s31
      %s20 = sphi 0, %s27
      %s21 = sphi 0, %s19
      %s22 = sphi 0, %s20
      %s23 = sphi 0, %s21
      %s24 = sphi 0, %s22
      %s34 = sphi 0, %s36
      %s37 = sphi 0, %s34
      %s38 = sphi 0, %s37
      %s54 = sphi 0, %s38
      %s60 = sphi 0, %s62
      %s63 = sphi 0, %s60
      %s64 = sphi 0, %s63
      %s80 = sphi 0, %s64
      %s86 = sphi 0, %s88
      %s89 = sphi 0, %s86
      %s90 = sphi 0, %s89
      %s106 = sphi 0, %s90
      %s114 = sphi 0, %s116
      %s117 = sphi 0, %s114
      %s118 = sphi 0, %s117
      %s134 = sphi 0, %s118
    $region4: #{patch_merging_forward.1} parent=1 // loop_header_branch
      %15 = sbr.rel (%p13) target = $region8
    $region5: #{patch_merging_forward.1} parent=1 // loop_body
      %s17 = ssub.s32 %s12, 1
      %s18 = ssub.s32 %s12, 2
      %s25 = sadd.s32 1, %s20
      %p26 = scmp.ge.s32.totalorder %s25, 1
      %s27 = scalar_select %p26, 0, %s25
      %s28 = sadd.s32 1, %s19
      %s29 = scalar_select %p26, %s28, %s19
      %p30 = scmp.ge.s32.totalorder %s29, 8
      %s31 = scalar_select %p30, 0, %s29
      %s32 = ssub.s32 %s19, %s31
      %p33 = scmp.eq.s32.totalorder %s32, 0
      %s35 = sadd.s32 %s34, 1
      %s36 = scalar_select %p33, %s34, %s35
      %p39 = pneg %p33
      %p40 = scmp.eq.s32.totalorder %s12, 7
      %p41 = por %p39, %p40
      %p42 = scmp.ne.s32.totalorder %s34, %s37
      %p43 = scmp.eq.s32.totalorder %s12, 0
      %p44 = por %p42, %p43
      %p45 = scmp.ne.s32.totalorder %s34, %s37
      %p46 = scmp.eq.s32.totalorder %s17, 7
      %p47 = por %p45, %p46
      %p48 = scmp.ne.s32.totalorder %s37, %s38
      %p49 = scmp.eq.s32.totalorder %s17, 0
      %p50 = por %p48, %p49
      %p51 = scmp.ne.s32.totalorder %s37, %s38
      %p52 = scmp.eq.s32.totalorder %s18, 7
      %p53 = por %p51, %p52
      %p55 = scmp.ne.s32.totalorder %s38, %s54
      %p56 = scmp.eq.s32.totalorder %s18, 0
      %p57 = por %p55, %p56
      %s58 = ssub.s32 %s20, %s27
      %p59 = scmp.eq.s32.totalorder %s58, 0
      %s61 = sadd.s32 %s60, 1
      %s62 = scalar_select %p59, %s60, %s61
      %p65 = pneg %p59
      %p66 = scmp.eq.s32.totalorder %s12, 7
      %p67 = por %p65, %p66
      %p68 = scmp.ne.s32.totalorder %s60, %s63
      %p69 = scmp.eq.s32.totalorder %s12, 0
      %p70 = por %p68, %p69
      %p71 = scmp.ne.s32.totalorder %s60, %s63
      %p72 = scmp.eq.s32.totalorder %s17, 7
      %p73 = por %p71, %p72
      %p74 = scmp.ne.s32.totalorder %s63, %s64
      %p75 = scmp.eq.s32.totalorder %s17, 0
      %p76 = por %p74, %p75
      %p77 = scmp.ne.s32.totalorder %s63, %s64
      %p78 = scmp.eq.s32.totalorder %s18, 7
      %p79 = por %p77, %p78
      %p81 = scmp.ne.s32.totalorder %s64, %s80
      %p82 = scmp.eq.s32.totalorder %s18, 0
      %p83 = por %p81, %p82
      %s84 = ssub.s32 %s20, %s27
      %p85 = scmp.eq.s32.totalorder %s84, 0
      %s87 = sadd.s32 %s86, 1
      %s88 = scalar_select %p85, %s86, %s87
      %p91 = pneg %p85
      %p92 = scmp.eq.s32.totalorder %s12, 7
      %p93 = por %p91, %p92
      %p94 = scmp.ne.s32.totalorder %s86, %s89
      %p95 = scmp.eq.s32.totalorder %s12, 0
      %p96 = por %p94, %p95
      %p97 = scmp.ne.s32.totalorder %s86, %s89
      %p98 = scmp.eq.s32.totalorder %s17, 7
      %p99 = por %p97, %p98
      %p100 = scmp.ne.s32.totalorder %s89, %s90
      %p101 = scmp.eq.s32.totalorder %s17, 0
      %p102 = por %p100, %p101
      %p103 = scmp.ne.s32.totalorder %s89, %s90
      %p104 = scmp.eq.s32.totalorder %s18, 7
      %p105 = por %p103, %p104
      %p107 = scmp.ne.s32.totalorder %s90, %s106
      %p108 = scmp.eq.s32.totalorder %s18, 0
      %p109 = por %p107, %p108
      %s110 = ssub.s32 %s19, %s31
      %s111 = ssub.s32 %s20, %s27
      %s112 = sor.u32 %s110, %s111
      %p113 = scmp.eq.s32.totalorder %s112, 0
      %s115 = sadd.s32 %s114, 1
      %s116 = scalar_select %p113, %s114, %s115
      %p119 = pneg %p113
      %p120 = scmp.eq.s32.totalorder %s12, 7
      %p121 = por %p119, %p120
      %p122 = scmp.ne.s32.totalorder %s114, %s117
      %p123 = scmp.eq.s32.totalorder %s12, 0
      %p124 = por %p122, %p123
      %p125 = scmp.ne.s32.totalorder %s114, %s117
      %p126 = scmp.eq.s32.totalorder %s17, 7
      %p127 = por %p125, %p126
      %p128 = scmp.ne.s32.totalorder %s117, %s118
      %p129 = scmp.eq.s32.totalorder %s17, 0
      %p130 = por %p128, %p129
      %p131 = scmp.ne.s32.totalorder %s117, %s118
      %p132 = scmp.eq.s32.totalorder %s18, 7
      %p133 = por %p131, %p132
      %p135 = scmp.ne.s32.totalorder %s118, %s134
      %p136 = scmp.eq.s32.totalorder %s18, 0
      %p137 = por %p135, %p136
      %p138 = scmp.le.s32.totalorder 1, %s12
      %p139 = scmp.lt.s32.totalorder %s12, 9
      %p140 = pnand %p138, %p139
      %p141 = pneg %p140
      // Predicated region
      $region9: #{patch_merging_forward.1} parent=5 // pred_check
        _
      $region10: #{patch_merging_forward.1} parent=5 // pred_check_branch
        %143 = sbr.rel (%p140) target = $region12
      $region11: #{patch_merging_forward.1} parent=5 // pred_region
        %s144 = ssub.s32 %s12, 1
        // Predicated region
        $region13: #{patch_merging_forward.1} parent=11 // pred_check
          %p145 = pneg %p76
        $region14: #{patch_merging_forward.1} parent=11 // pred_check_branch
          %147 = sbr.rel (%p145) target = $region16
        $region15: #{patch_merging_forward.1} parent=11 // pred_region
          %p148 = scmp.lt.s32.totalorder %s22, 0
          %s149 = scalar_select %p148, %s22, 0
          %s150 = smul.addr %s149, 8
          %s151 = scalar_lea.vmem %s1, %s150
        $region16: #{patch_merging_forward.1} parent=11 // pred_fallthru
          _
        // Predicated region
        $region17: #{patch_merging_forward.1} parent=11 // pred_check
          %p152 = pneg %p102
        $region18: #{patch_merging_forward.1} parent=11 // pred_check_branch
          %154 = sbr.rel (%p152) target = $region20
        $region19: #{patch_merging_forward.1} parent=11 // pred_region
          %p155 = scmp.lt.s32.totalorder %s22, 0
          %s156 = scalar_select %p155, %s22, 0
          %s157 = scalar_lea.vmem %s2, %s156
        $region20: #{patch_merging_forward.1} parent=11 // pred_fallthru
          _
      $region12: #{patch_merging_forward.1} parent=5 // pred_fallthru
        _
      %p158 = scmp.lt.s32.totalorder %s12, 8
      // Predicated region
      $region21: #{patch_merging_forward.1} parent=5 // pred_check
        %p159 = pneg %p158
      $region22: #{patch_merging_forward.1} parent=5 // pred_check_branch
        %161 = sbr.rel (%p159) target = $region24
      $region23: #{patch_merging_forward.1} parent=5 // pred_region
        // Predicated region
        $region25: #{patch_merging_forward.1} parent=23 // pred_check
          %p162 = pneg %p44
        $region26: #{patch_merging_forward.1} parent=23 // pred_check_branch
          %164 = sbr.rel (%p162) target = $region28
        $region27: #{patch_merging_forward.1} parent=23 // pred_region
          %s165 = smul.u32 2, %s19
          %p166 = scmp.lt.s32.totalorder %s165, 15
          %s167 = scalar_select %p166, %s165, 15
          %s168 = smul.addr %s167, 8
          %s169 = scalar_lea.vmem %s0, %s168
          %s170 = smul.u32 2, %s19
        $region28: #{patch_merging_forward.1} parent=23 // pred_fallthru
          _
      $region24: #{patch_merging_forward.1} parent=5 // pred_fallthru
        _
      %p171 = scmp.le.s32.totalorder 1, %s12
      %p172 = scmp.lt.s32.totalorder %s12, 9
      %p173 = pnand %p171, %p172
      %p174 = pneg %p173
      // Predicated region
      $region29: #{patch_merging_forward.1} parent=5 // pred_check
        _
      $region30: #{patch_merging_forward.1} parent=5 // pred_check_branch
        %176 = sbr.rel (%p173) target = $region32
      $region31: #{patch_merging_forward.1} parent=5 // pred_region
        %s177 = ssub.s32 %s12, 1
        %s178 = smul.u32 2, %s21
        %p179 = scmp.lt.s32.totalorder %s178, 15
        %s180 = scalar_select %p179, %s178, 15
        %s181 = smul.addr %s180, 8
        %s182 = scalar_lea.vmem %s0, %s181
        %p183 = pneg %p50
        %p184 = pneg %p47
        %p185 = scmp.lt.s32.totalorder %s22, 0
        %s186 = scalar_select %p185, %s22, 0
        %s187 = smul.addr %s186, 8
        %s188 = scalar_lea.vmem %s1, %s187
        %p189 = pneg %p76
        %p190 = pneg %p73
        %p191 = scmp.lt.s32.totalorder %s22, 0
        %s192 = scalar_select %p191, %s22, 0
        %s193 = scalar_lea.vmem %s2, %s192
        %p194 = pneg %p102
        %p195 = pneg %p99
        %p196 = pneg %p130
        %p197 = pneg %p127
        %s198 = sand.u32 %s117, 1
        %s199 = scalar_lea.sflag [#allocation3], %s198
        %s200 = sand.u32 %s117, 1
        %s201 = smul.addr %s200, 16
        %s202 = scalar_lea.vmem [#allocation2], %s201
        %s203 = smul.u32 2, %s21
        %p204 = scmp.lt.s32.totalorder %s203, 15
        %s205 = scalar_select %p204, %s203, 15
        %s206 = smul.addr %s205, 8
        %s207 = scalar_lea.vmem %s0, %s206
        %s208 = smul.u32 2, %s21
        %p209 = scmp.lt.s32.totalorder %s22, 0
        %s210 = scalar_select %p209, %s22, 0
        %s211 = smul.addr %s210, 8
        %s212 = scalar_lea.vmem %s1, %s211
        %p213 = scmp.lt.s32.totalorder %s22, 0
        %s214 = scalar_select %p213, %s22, 0
        %s215 = scalar_lea.vmem %s2, %s214
        %s216 = smul.u32 2, %s21
        %v217 = vld [vmem:[%s207] sm:$0xff]
        %v218 = vld [vmem:[%s207 + $0x8] sm:$0xff]
        %v219 = vld [vmem:[%s212] sm:$0xff]
        %v220 = vld [vmem:[%s212 + $0x8] sm:$0xff]
        %v221 = vld [vmem:[%s215] sm:$0x1]
        %v223 = vlaneseq
        %v224 = vshrl.u32 %v223, 7
        %v225 = vsub.s32 0, %v224
        %v226 = vrot.slane %v221, %v225
        %vm228 = vcmask 130048
        %v230 = vsel %vm228, %v217, 0
        %v233 = vsel %vm228, %v218, 0
        %235 = vmatprep.subr.mxu0 0.0
        %236 = vmatpush1.msra.mxu0 0.0
        %237 = vmatprep.subr.mxu0 0.0
        %238 = vmatpush1.msra.mxu0 0.0
        %239 = vmatprep.subr.mxu0 0.0
        %240 = vmatpush1.msra.mxu0 0.0
        %241 = vmatprep.subr.mxu0 0.0
        %242 = vmatpush1.msra.mxu0 0.0
        %243 = vmatprep.subr.mxu0 0.0
        %244 = vmatpush1.msra.mxu0 0.0
        %245 = vmatprep.subr.mxu0 0.0
        %246 = vmatpush1.msra.mxu0 0.0
        %247 = vmatprep.subr.mxu0 0.0
        %248 = vmatpush1.msra.mxu0 0.0
        %249 = vmatprep.subr.mxu0 0.0
        %250 = vmatpush1.msra.mxu0 0.0
        %251 = vmatprep.subr.mxu0 0.0
        %252 = vmatpush1.msra.mxu0 0.0
        %253 = vmatprep.subr.mxu0 0.0
        %254 = vmatpush1.msra.mxu0 0.0
        %255 = vmatprep.subr.mxu0 0.0
        %256 = vmatpush1.msra.mxu0 0.0
        %257 = vmatprep.subr.mxu0 0.0
        %258 = vmatpush1.msra.mxu0 0.0
        %259 = vmatprep.subr.mxu0 0.0
        %260 = vmatpush1.msra.mxu0 0.0
        %261 = vmatprep.subr.mxu0 0.0
        %262 = vmatpush1.msra.mxu0 0.0
        %263 = vmatprep.subr.mxu0 0.0
        %264 = vmatpush1.msra.mxu0 %v220
        %265 = vmatprep.subr.mxu0 0.0
        %266 = vmatpush1.msra.mxu0 %v219
        %267 = vmatprep.subr.mxu0 0.0
        %268 = vmatpush2.msra.mxu0 0.0
        %269 = vmatprep.subr.mxu0 0.0
        %270 = vmatpush2.msra.mxu0 0.0
        %271 = vmatprep.subr.mxu0 0.0
        %272 = vmatpush2.msra.mxu0 0.0
        %273 = vmatprep.subr.mxu0 0.0
        %274 = vmatpush2.msra.mxu0 0.0
        %275 = vmatprep.subr.mxu0 0.0
        %276 = vmatpush2.msra.mxu0 0.0
        %277 = vmatprep.subr.mxu0 0.0
        %278 = vmatpush2.msra.mxu0 0.0
        %279 = vmatprep.subr.mxu0 0.0
        %280 = vmatpush2.msra.mxu0 0.0
        %281 = vmatprep.subr.mxu0 0.0
        %282 = vmatpush2.msra.mxu0 0.0
        %283 = vmatprep.subr.mxu0 0.0
        %284 = vmatpush2.msra.mxu0 0.0
        %285 = vmatprep.subr.mxu0 0.0
        %286 = vmatpush2.msra.mxu0 0.0
        %287 = vmatprep.subr.mxu0 0.0
        %288 = vmatpush2.msra.mxu0 0.0
        %289 = vmatprep.subr.mxu0 0.0
        %290 = vmatpush2.msra.mxu0 0.0
        %291 = vmatprep.subr.mxu0 0.0
        %292 = vmatpush2.msra.mxu0 0.0
        %293 = vmatprep.subr.mxu0 0.0
        %294 = vmatpush2.msra.mxu0 0.0
        %295 = vmatprep.subr.mxu0 0.0
        %296 = vmatpush2.msra.mxu0 0.0
        %297 = vmatprep.subr.mxu0 0.0
        %298 = vmatpush2.msra.mxu0 0.0
        %299 = vmatprep.mubr.f32.mxu0 0.0
        %300 = vmatmul.mubr.f32.gmra.mxu0 %v230
        %v301 = vpop.f32.mrf.mxu0
        %v302 = vadd.f32 %v226, %v301
        %v303 = vpop.f32.mrf.mxu0
        %304 = vmatprep.mubr.f32.mxu0 0.0
        %305 = vmatmul.mubr.f32.gmra.mxu0 %v233
        %v306 = vpop.f32.mrf.mxu0
        %v307 = vadd.f32 %v226, %v306
        %v308 = vpop.f32.mrf.mxu0
        %309 = vdwg.mxu0
        %vm310 = vcmask 261120
        %311 = vst.msk [vmem:[%s202] sm:$0xff] %vm310, %v302
        %312 = vst.msk [vmem:[%s202 + $0x8] sm:$0xff] %vm310, %v307
        %s313 = sand.u32 %s117, 1
        %s314 = scalar_lea.sflag [#allocation3], %s313
        %s315 = sand.u32 %s117, 1
        %s316 = smul.addr %s315, 16
        %s317 = scalar_lea.vmem [#allocation2], %s316
        // Predicated region
        $region33: #{patch_merging_forward.1} parent=31 // pred_check
          %p318 = pneg %p127
        $region34: #{patch_merging_forward.1} parent=31 // pred_check_branch
          %320 = sbr.rel (%p318) target = $region36
        $region35: #{patch_merging_forward.1} parent=31 // pred_region
          %s321 = smul.u32 2, %s21
          %s323 = ssub.s32 256, 256
          %324 = vsyncadd %s314, %s323
          %s325 = sadd.s32 %s22, %s321
          %s326 = smul.addr %s325, 128
          %s327 = scalar_lea.hbm %s3, %s326
          %s328 = sshll.u32 %s317, 4
          %s329 = int_to_ptr.vmem [resolvable:$true] %s328
          %334 = dma.vmem_to_hbm [thread:$0]  %s329, 256, %s327, %s314, 128, 128, 8
        $region36: #{patch_merging_forward.1} parent=31 // pred_fallthru
          _
      $region32: #{patch_merging_forward.1} parent=5 // pred_fallthru
        _
      %p335 = scmp.le.s32.totalorder 2, %s12
      // Predicated region
      $region37: #{patch_merging_forward.1} parent=5 // pred_check
        %p336 = pneg %p335
      $region38: #{patch_merging_forward.1} parent=5 // pred_check_branch
        %338 = sbr.rel (%p336) target = $region40
      $region39: #{patch_merging_forward.1} parent=5 // pred_region
        %s339 = ssub.s32 %s12, 2
        // Predicated region
        $region41: #{patch_merging_forward.1} parent=39 // pred_check
          %p340 = pneg %p133
        $region42: #{patch_merging_forward.1} parent=39 // pred_check_branch
          %342 = sbr.rel (%p340) target = $region44
        $region43: #{patch_merging_forward.1} parent=39 // pred_region
          %s343 = sand.u32 %s118, 1
          %s344 = scalar_lea.sflag [#allocation3], %s343
          %s345 = sand.u32 %s118, 1
          %s346 = smul.addr %s345, 16
          %s347 = scalar_lea.vmem [#allocation2], %s346
          %348 = dma.done %s344, 256
        $region44: #{patch_merging_forward.1} parent=39 // pred_fallthru
          _
      $region40: #{patch_merging_forward.1} parent=5 // pred_fallthru
        _
    $region6: #{patch_merging_forward.1} parent=1 // loop_footer
      %s16 = sadd.s32 1, %s12
    $region7: #{patch_merging_forward.1} parent=1 // loop_footer_branch
      %11 = sbr.rel target = $region3
    $region8: #{patch_merging_forward.1} parent=1 // loop_exit
      _
    %349 = vsyncpa [#allocation3], 1
    %s350 = scalar_lea.sflag [#allocation3], 1
    %351 = vsyncpa %s350, 1

</llo_original>
